<compile_context>
chip_gen: v6e
topology: v6e:2x2x1
jax: 0.10.0
libtpu: 0.0.40
codegen_flags: <defaults>
</compile_context>

<pallas_src>
import jax
import jax.numpy as jnp
from jax import lax
from jax.experimental import pallas as pl
from jax.experimental.pallas import tpu as pltpu


def _round_up(x, m):
    return pl.cdiv(x, m) * m


def _gated_conv_kernel(p_ref, w_ref, b_ref, o_ref):
    # p_ref: (TM, Kp)      bf16 im2col patch tile (K zero-padded to 128 mult.)
    # w_ref: (Kp, 3*Cp)    bf16 weight; gate g occupies cols [g*Cp, g*Cp+Cout)
    # b_ref: (1, 3*Cp)     f32 bias, padded the same way (zeros elsewhere)
    # o_ref: (TM, Cp)      f32 gated output tile (lane-dense, Cp % 128 == 0)
    h = jnp.dot(p_ref[...], w_ref[...], preferred_element_type=jnp.float32)
    h = h + b_ref[...]                        # f32 VPU, sublane broadcast
    cp = o_ref.shape[-1]                      # 128-aligned gate stride
    a = h[:, 0 * cp:1 * cp]                   # vreg-aligned views, no XLU work
    b = h[:, 1 * cp:2 * cp]
    c = h[:, 2 * cp:3 * cp]
    o_ref[...] = a + b * jax.nn.sigmoid(c)    # sigmoid -> EUP slot (free-ish)


def gated_conv2d(x_nchw, weight, bias, padding, *, tm=512):
    """x_nchw: [N, Cin, H, W]; weight: [3*Cout, Cin, KH, KW]; bias: [3*Cout]."""
    N, Cin, H, W = x_nchw.shape
    Cout3, _, KH, KW = weight.shape
    Cout = Cout3 // 3

    Ho = H + 2 * padding - KH + 1
    Wo = W + 2 * padding - KW + 1
    K = KH * KW * Cin
    M = N * Ho * Wo

    # MXU / vreg friendly padded sizes.
    Kp = _round_up(K, 128)          # contraction dim (lane-aligned matmul K)
    Cp = _round_up(Cout, 128)       # per-gate output columns (lane-dense out)

    # ---- glue: NCHW -> NHWC (bf16), spatial pad, im2col ----
    x = jnp.transpose(x_nchw, (0, 2, 3, 1)).astype(jnp.bfloat16)       # NHWC
    x = jnp.pad(x, ((0, 0), (padding, padding), (padding, padding), (0, 0)))
    cols = []
    for i in range(KH):
        for j in range(KW):
            cols.append(x[:, i:i + Ho, j:j + Wo, :])                   # [N,Ho,Wo,Cin]
    patches = jnp.concatenate(cols, axis=-1).reshape(M, K)             # bf16 [M, K]

    # Cap the row tile so the "parallel" M grid has >= 2 steps (v7x: 2 TCs),
    # keep it a multiple of 8 (sublane), then pad M up to a multiple of it.
    tm = max(8, min(tm, _round_up(pl.cdiv(M, 2), 8)))
    M_pad = _round_up(M, tm)
    patches = jnp.pad(patches, ((0, M_pad - M), (0, Kp - K)))          # bf16 [M_pad, Kp]

    # conv weight [3*Cout, Cin, KH, KW] -> [K, 3, Cout] matching patch order,
    # then pad each gate's column block to Cp so gate boundaries are 128-aligned.
    w3 = jnp.transpose(weight, (2, 3, 1, 0)).reshape(K, 3, Cout)
    w3 = jnp.pad(w3, ((0, Kp - K), (0, 0), (0, Cp - Cout)))
    w2d = w3.reshape(Kp, 3 * Cp).astype(jnp.bfloat16)
    b3 = jnp.pad(bias.reshape(3, Cout), ((0, 0), (0, Cp - Cout)))
    b2d = b3.reshape(1, 3 * Cp).astype(jnp.float32)

    grid = (M_pad // tm,)
    cost = pl.CostEstimate(
        flops=2 * M_pad * Kp * 3 * Cp,
        transcendentals=M_pad * Cp,
        bytes_accessed=(M_pad * Kp * 2          # bf16 patches
                        + Kp * 3 * Cp * 2       # bf16 weights
                        + 3 * Cp * 4            # f32 bias
                        + M_pad * Cp * 4),      # f32 output
    )

    # ---- Pallas hot path: matmul + bias + gated activation ----
    out_flat = pl.pallas_call(
        _gated_conv_kernel,
        out_shape=jax.ShapeDtypeStruct((M_pad, Cp), jnp.float32),
        grid_spec=pltpu.PrefetchScalarGridSpec(
            num_scalar_prefetch=0,
            grid=grid,
            in_specs=[
                pl.BlockSpec((tm, Kp), lambda i: (i, 0)),
                pl.BlockSpec((Kp, 3 * Cp), lambda i: (0, 0)),   # resident weight
                pl.BlockSpec((1, 3 * Cp), lambda i: (0, 0)),    # resident bias
            ],
            out_specs=pl.BlockSpec((tm, Cp), lambda i: (i, 0)),
        ),
        compiler_params=pltpu.CompilerParams(
            dimension_semantics=("parallel",),
            vmem_limit_bytes=64 * 1024 * 1024),
        cost_estimate=cost,
    )(patches, w2d, b2d)

    out = out_flat[:M, :Cout].reshape(N, Ho, Wo, Cout)
    return jnp.transpose(out, (0, 3, 1, 2))                            # back to NCHW


def _reference(x_nchw, weight, bias, padding):
    """Pure-JAX reference (lax conv) for a correctness sanity check."""
    h = lax.conv_general_dilated(
        x_nchw.astype(jnp.float32), weight.astype(jnp.float32),
        window_strides=(1, 1),
        padding=((padding, padding), (padding, padding)),
        dimension_numbers=("NCHW", "OIHW", "NCHW"))
    h = h + bias.reshape(1, -1, 1, 1)
    cout = h.shape[1] // 3
    a, b, c = h[:, :cout], h[:, cout:2 * cout], h[:, 2 * cout:]
    return a + b * jax.nn.sigmoid(c)


if __name__ == "__main__":
    # module config: GatedConv2d(args, n_inputs=4, n_outputs=4, kernel_size=3, padding=1)
    n_inputs, n_outputs, kernel_size, padding = 4, 4, 3, 1
    N, H, W = 2, 16, 16

    key = jax.random.PRNGKey(0)
    kx, kw, kb = jax.random.split(key, 3)
    x = jax.random.normal(kx, (N, n_inputs, H, W), dtype=jnp.float32)
    # deterministic param init (Conv2d shapes: [3*Cout, Cin, KH, KW], [3*Cout])
    fan_in = n_inputs * kernel_size * kernel_size
    bound = 1.0 / (fan_in ** 0.5)
    weight = jax.random.uniform(kw, (n_outputs * 3, n_inputs, kernel_size, kernel_size),
                                minval=-bound, maxval=bound, dtype=jnp.float32)
    bias = jax.random.uniform(kb, (n_outputs * 3,),
                              minval=-bound, maxval=bound, dtype=jnp.float32)

    out = gated_conv2d(x, weight, bias, padding)
    out = jax.block_until_ready(out)

    ref = _reference(x, weight, bias, padding)
    assert out.shape == (N, n_outputs, H, W)
    # bf16 MXU inputs with f32 accumulation -> loosened tolerance vs f32 reference.
    err = float(jnp.max(jnp.abs(out - ref)))
    assert jnp.allclose(out, ref, atol=3e-2, rtol=3e-2), err

    print("KERNEL_OK")
</pallas_src>

<mosaic_0001>
module attributes {stable_mosaic.version = 11 : i64} {
  func.func @_gated_conv_kernel(%arg0: i32, %arg1: memref<256x128xbf16, #tpu.memory_space<vmem>>, %arg2: memref<128x384xbf16, #tpu.memory_space<vmem>>, %arg3: memref<1x384xf32, #tpu.memory_space<vmem>>, %arg4: memref<256x128xf32, #tpu.memory_space<vmem>>) attributes {dimension_semantics = [#tpu.dimension_semantics<parallel>], iteration_bounds = array<i64: 2>, scalar_prefetch = 0 : i64, scratch_operands = 0 : i64, tpu.core_type = #tpu.core_type<tc>, window_params = [{transform_indices = @transform_0, window_bounds = array<i64: 256, 128>}, {pipeline_mode = #tpu.pipeline_mode<synchronous>, transform_indices = @transform_1, window_bounds = array<i64: 128, 384>}, {pipeline_mode = #tpu.pipeline_mode<synchronous>, transform_indices = @transform_2, window_bounds = array<i64: 1, 384>}, {transform_indices = @transform_3, window_bounds = array<i64: 256, 128>}]} {
    %c0 = arith.constant 0 : index
    %c0_0 = arith.constant 0 : index
    %0 = vector.load %arg1[%c0, %c0_0] : memref<256x128xbf16, #tpu.memory_space<vmem>>, vector<256x128xbf16>
    %c0_1 = arith.constant 0 : index
    %c0_2 = arith.constant 0 : index
    %1 = vector.load %arg2[%c0_1, %c0_2] : memref<128x384xbf16, #tpu.memory_space<vmem>>, vector<128x384xbf16>
    %cst = arith.constant dense<0.000000e+00> : vector<256x384xf32>
    %2 = tpu.matmul %0, %1, %cst {dimension_numbers = #tpu.dot_dimension_numbers<[1], [0], [0], [1], [0, 0, 1, 1], [], []>} : vector<256x128xbf16>, vector<128x384xbf16>, vector<256x384xf32> -> vector<256x384xf32>
    %c0_3 = arith.constant 0 : index
    %c0_4 = arith.constant 0 : index
    %3 = vector.load %arg3[%c0_3, %c0_4] : memref<1x384xf32, #tpu.memory_space<vmem>>, vector<1x384xf32>
    %4 = vector.broadcast %3 : vector<1x384xf32> to vector<256x384xf32>
    %5 = arith.addf %2, %4 : vector<256x384xf32>
    %6 = vector.extract_strided_slice %5 {offsets = [0, 0], sizes = [256, 128], strides = [1, 1]} : vector<256x384xf32> to vector<256x128xf32>
    %7 = vector.extract_strided_slice %5 {offsets = [0, 128], sizes = [256, 128], strides = [1, 1]} : vector<256x384xf32> to vector<256x128xf32>
    %8 = vector.extract_strided_slice %5 {offsets = [0, 256], sizes = [256, 128], strides = [1, 1]} : vector<256x384xf32> to vector<256x128xf32>
    %9 = arith.negf %8 : vector<256x128xf32>
    %10 = math.exp %9 : vector<256x128xf32>
    %cst_5 = arith.constant 1.000000e+00 : f32
    %11 = vector.broadcast %cst_5 : f32 to vector<256x128xf32>
    %12 = arith.addf %11, %10 : vector<256x128xf32>
    %13 = arith.divf %11, %12 : vector<256x128xf32>
    %14 = arith.mulf %7, %13 : vector<256x128xf32>
    %15 = arith.addf %6, %14 : vector<256x128xf32>
    %c0_6 = arith.constant 0 : index
    %c0_7 = arith.constant 0 : index
    %16 = vector.load %arg4[%c0_6, %c0_7] : memref<256x128xf32, #tpu.memory_space<vmem>>, vector<256x128xf32>
    tpu.vector_store %arg4[%c0_6, %c0_7], %15 {strides = array<i32>} : memref<256x128xf32, #tpu.memory_space<vmem>>, vector<256x128xf32>,
    return
  }
  func.func @transform_0(%arg0: i32) -> (i32, i32) {
    %c0_i32 = arith.constant 0 : i32
    %c0_i32_0 = arith.constant 0 : i32
    return %arg0, %c0_i32 : i32, i32
  }
  func.func @transform_1(%arg0: i32) -> (i32, i32) {
    %c0_i32 = arith.constant 0 : i32
    %c0_i32_0 = arith.constant 0 : i32
    %c0_i32_1 = arith.constant 0 : i32
    return %c0_i32, %c0_i32_0 : i32, i32
  }
  func.func @transform_2(%arg0: i32) -> (i32, i32) {
    %c0_i32 = arith.constant 0 : i32
    %c0_i32_0 = arith.constant 0 : i32
    %c0_i32_1 = arith.constant 0 : i32
    return %c0_i32, %c0_i32_0 : i32, i32
  }
  func.func @transform_3(%arg0: i32) -> (i32, i32) {
    %c0_i32 = arith.constant 0 : i32
    %c0_i32_0 = arith.constant 0 : i32
    return %arg0, %c0_i32 : i32, i32
  }
}

</mosaic_0001>

<llo_original>
// kernel: tpu_custom_call.1
$region0: #{tpu_custom_call.1}
  #allocation0 [shape = 'u32[]', space=smem, size = 0x4, offset = 0x4, fixed_abs, tag = 'smem constant byte address 0x4 - core index']
  #allocation1 [shape = 'u32[144,128]{1,0:T(1,128)}', space=vmem, size = 0x12000, scoped, tag = 'internal scratch']
  %s0 = inlined_call_operand.hbm [shape: bf16[512,128], index: 0, kind: input, shape index: {}]
  %s1 = inlined_call_operand.hbm [shape: bf16[128,384], index: 1, kind: input, shape index: {}]
  %s2 = inlined_call_operand.vmem [shape: f32[1,384], index: 2, kind: input, shape index: {}]
  %s3 = inlined_call_operand.hbm [shape: f32[512,128], index: 3, kind: output, shape index: {}]
  %s4 = sld [smem:[#allocation0]]
  $region53: #{tpu_custom_call.1} parent=0
    _
  %s6 = ssub.s32 1, %s4
  %s7 = scalar_select 0, %s6, %s4
  $region1: #{tpu_custom_call.1} parent=0
    #allocation2 [shape = 'u8[131072]{0}', space=vmem, size = 0x20000, scoped, tag = 'input window, operand 0']
    #allocation3 [shape = 's32[2]{0}', space=sflag, size = 0x8, scoped, tag = 'scoped memory for tpu_custom_call.1']
    #allocation4 [shape = 's32[2]{0}', space=sflag, size = 0x8, scoped, tag = 'scoped memory for tpu_custom_call.1']
    #allocation5 [shape = 'u8[98304]{0}', space=vmem, size = 0x18000, scoped, tag = 'input window, operand 1, single buffered']
    #allocation6 [shape = 's32[1]{0}', space=sflag, size = 0x4, scoped, tag = 'scoped memory for tpu_custom_call.1']
    #allocation7 [shape = 'u8[262144]{0}', space=vmem, size = 0x40000, scoped, tag = 'output window, operand 0']
    %8 = vsyncpa [#allocation3], 0
    %s9 = scalar_lea.sflag [#allocation3], 1
    %10 = vsyncpa %s9, 0
    %11 = vsyncpa [#allocation6], 0
    %12 = vsyncpa [#allocation4], 0
    %s13 = scalar_lea.sflag [#allocation4], 1
    %14 = vsyncpa %s13, 0
    loop: start=0, step=1, limit=4
    $region2: #{tpu_custom_call.1} parent=1 // loop_pre_header
      _
    $region3: #{tpu_custom_call.1} parent=1 // loop_header
      %s16 = sphi 0, %s20
      %p17 = scmp.ge.s32.totalorder %s16, 4
      %s26 = sphi 0, %s28
      %s29 = sphi 0, %s26
      %s30 = sphi 0, %s29
      %s46 = sphi 0, %s30
      %s50 = sphi 0, %s50
      %s52 = sphi 0, %s50
      %s53 = sphi 0, %s52
      %s67 = sphi 0, %s53
      %s71 = sphi 0, %s71
      %s73 = sphi 0, %s71
      %s74 = sphi 0, %s73
      %s88 = sphi 0, %s74
      %s94 = sphi 0, %s96
      %s97 = sphi 0, %s94
      %s98 = sphi 0, %s97
      %s114 = sphi 0, %s98
    $region4: #{tpu_custom_call.1} parent=1 // loop_header_branch
      %19 = sbr.rel (%p17) target = $region8
    $region5: #{tpu_custom_call.1} parent=1 // loop_body
      %s21 = ssub.s32 %s16, 1
      %s22 = ssub.s32 %s16, 2
      %s23 = sadd.s32 %s16, 1
      %s24 = ssub.s32 %s16, %s23
      %p25 = scmp.eq.s32.totalorder %s24, 0
      %s27 = sadd.s32 %s26, 1
      %s28 = scalar_select %p25, %s26, %s27
      %p31 = pneg %p25
      %p32 = scmp.eq.s32.totalorder %s16, 1
      %p33 = por %p31, %p32
      %p34 = scmp.ne.s32.totalorder %s26, %s29
      %p35 = scmp.eq.s32.totalorder %s16, 0
      %p36 = por %p34, %p35
      %p37 = scmp.ne.s32.totalorder %s26, %s29
      %p38 = scmp.eq.s32.totalorder %s21, 1
      %p39 = por %p37, %p38
      %p40 = scmp.ne.s32.totalorder %s29, %s30
      %p41 = scmp.eq.s32.totalorder %s21, 0
      %p42 = por %p40, %p41
      %p43 = scmp.ne.s32.totalorder %s29, %s30
      %p44 = scmp.eq.s32.totalorder %s22, 1
      %p45 = por %p43, %p44
      %p47 = scmp.ne.s32.totalorder %s30, %s46
      %p48 = scmp.eq.s32.totalorder %s22, 0
      %p49 = por %p47, %p48
      %s51 = sadd.s32 %s50, 1
      %p54 = scmp.eq.s32.totalorder %s16, 1
      %p55 = scmp.ne.s32.totalorder %s50, %s52
      %p56 = scmp.eq.s32.totalorder %s16, 0
      %p57 = por %p55, %p56
      %p58 = scmp.ne.s32.totalorder %s50, %s52
      %p59 = scmp.eq.s32.totalorder %s21, 1
      %p60 = por %p58, %p59
      %p61 = scmp.ne.s32.totalorder %s52, %s53
      %p62 = scmp.eq.s32.totalorder %s21, 0
      %p63 = por %p61, %p62
      %p64 = scmp.ne.s32.totalorder %s52, %s53
      %p65 = scmp.eq.s32.totalorder %s22, 1
      %p66 = por %p64, %p65
      %p68 = scmp.ne.s32.totalorder %s53, %s67
      %p69 = scmp.eq.s32.totalorder %s22, 0
      %p70 = por %p68, %p69
      %s72 = sadd.s32 %s71, 1
      %p75 = scmp.eq.s32.totalorder %s16, 1
      %p76 = scmp.ne.s32.totalorder %s71, %s73
      %p77 = scmp.eq.s32.totalorder %s16, 0
      %p78 = por %p76, %p77
      %p79 = scmp.ne.s32.totalorder %s71, %s73
      %p80 = scmp.eq.s32.totalorder %s21, 1
      %p81 = por %p79, %p80
      %p82 = scmp.ne.s32.totalorder %s73, %s74
      %p83 = scmp.eq.s32.totalorder %s21, 0
      %p84 = por %p82, %p83
      %p85 = scmp.ne.s32.totalorder %s73, %s74
      %p86 = scmp.eq.s32.totalorder %s22, 1
      %p87 = por %p85, %p86
      %p89 = scmp.ne.s32.totalorder %s74, %s88
      %p90 = scmp.eq.s32.totalorder %s22, 0
      %p91 = por %p89, %p90
      %s92 = ssub.s32 %s16, %s23
      %p93 = scmp.eq.s32.totalorder %s92, 0
      %s95 = sadd.s32 %s94, 1
      %s96 = scalar_select %p93, %s94, %s95
      %p99 = pneg %p93
      %p100 = scmp.eq.s32.totalorder %s16, 1
      %p101 = por %p99, %p100
      %p102 = scmp.ne.s32.totalorder %s94, %s97
      %p103 = scmp.eq.s32.totalorder %s16, 0
      %p104 = por %p102, %p103
      %p105 = scmp.ne.s32.totalorder %s94, %s97
      %p106 = scmp.eq.s32.totalorder %s21, 1
      %p107 = por %p105, %p106
      %p108 = scmp.ne.s32.totalorder %s97, %s98
      %p109 = scmp.eq.s32.totalorder %s21, 0
      %p110 = por %p108, %p109
      %p111 = scmp.ne.s32.totalorder %s97, %s98
      %p112 = scmp.eq.s32.totalorder %s22, 1
      %p113 = por %p111, %p112
      %p115 = scmp.ne.s32.totalorder %s98, %s114
      %p116 = scmp.eq.s32.totalorder %s22, 0
      %p117 = por %p115, %p116
      %p118 = scmp.le.s32.totalorder 1, %s16
      %p119 = scmp.lt.s32.totalorder %s16, 3
      %p120 = pnand %p118, %p119
      %p121 = pneg %p120
      // Predicated region
      $region9: #{tpu_custom_call.1} parent=5 // pred_check
        _
      $region10: #{tpu_custom_call.1} parent=5 // pred_check_branch
        %123 = sbr.rel (%p120) target = $region12
      $region11: #{tpu_custom_call.1} parent=5 // pred_region
        %s124 = ssub.s32 %s16, 1
        // Predicated region
        $region13: #{tpu_custom_call.1} parent=11 // pred_check
          %p125 = pneg %p63
        $region14: #{tpu_custom_call.1} parent=11 // pred_check_branch
          %127 = sbr.rel (%p125) target = $region16
        $region15: #{tpu_custom_call.1} parent=11 // pred_region
          %s129 = ssub.s32 3072, 3072
          %130 = vsyncadd [#allocation6], %s129
          %s131 = sshll.u32 [#allocation5], 4
          %s132 = int_to_ptr.vmem [resolvable:$true] %s131
          %137 = dma.hbm_to_vmem [thread:$0]  %s1, 3072, %s132, [#allocation6], 192, 192, 12
        $region16: #{tpu_custom_call.1} parent=11 // pred_fallthru
          _
        // Predicated region
        $region17: #{tpu_custom_call.1} parent=11 // pred_check
          %p138 = pneg %p84
        $region18: #{tpu_custom_call.1} parent=11 // pred_check_branch
          %140 = sbr.rel (%p138) target = $region20
        $region19: #{tpu_custom_call.1} parent=11 // pred_region
          _
        $region20: #{tpu_custom_call.1} parent=11 // pred_fallthru
          _
      $region12: #{tpu_custom_call.1} parent=5 // pred_fallthru
        _
      %p141 = scmp.lt.s32.totalorder %s16, 2
      // Predicated region
      $region21: #{tpu_custom_call.1} parent=5 // pred_check
        %p142 = pneg %p141
      $region22: #{tpu_custom_call.1} parent=5 // pred_check_branch
        %144 = sbr.rel (%p142) target = $region24
      $region23: #{tpu_custom_call.1} parent=5 // pred_region
        // Predicated region
        $region25: #{tpu_custom_call.1} parent=23 // pred_check
          %p145 = pneg %p36
        $region26: #{tpu_custom_call.1} parent=23 // pred_check_branch
          %147 = sbr.rel (%p145) target = $region28
        $region27: #{tpu_custom_call.1} parent=23 // pred_region
          %s148 = sand.u32 %s26, 1
          %s149 = scalar_lea.sflag [#allocation3], %s148
          %s150 = sand.u32 %s26, 1
          %s151 = smul.addr %s150, 128
          %s152 = scalar_lea.vmem [#allocation2], %s151
          %s153 = smul.u32 32, %s16
          %s155 = ssub.s32 2048, 2048
          %156 = vsyncadd %s149, %s155
          %s157 = smul.addr %s153, 64
          %s158 = scalar_lea.hbm %s0, %s157
          %s159 = sshll.u32 %s152, 4
          %s160 = int_to_ptr.vmem [resolvable:$true] %s159
          %165 = dma.hbm_to_vmem [thread:$0]  %s158, 2048, %s160, %s149, 64, 64, 4
        $region28: #{tpu_custom_call.1} parent=23 // pred_fallthru
          _
      $region24: #{tpu_custom_call.1} parent=5 // pred_fallthru
        _
      %p166 = scmp.le.s32.totalorder 1, %s16
      %p167 = scmp.lt.s32.totalorder %s16, 3
      %p168 = pnand %p166, %p167
      %p169 = pneg %p168
      // Predicated region
      $region29: #{tpu_custom_call.1} parent=5 // pred_check
        _
      $region30: #{tpu_custom_call.1} parent=5 // pred_check_branch
        %171 = sbr.rel (%p168) target = $region32
      $region31: #{tpu_custom_call.1} parent=5 // pred_region
        %s172 = ssub.s32 %s16, 1
        %s173 = sand.u32 %s29, 1
        %s174 = scalar_lea.sflag [#allocation3], %s173
        %s175 = sand.u32 %s29, 1
        %s176 = smul.addr %s175, 128
        %s177 = scalar_lea.vmem [#allocation2], %s176
        // Predicated region
        $region33: #{tpu_custom_call.1} parent=31 // pred_check
          %p178 = pneg %p42
        $region34: #{tpu_custom_call.1} parent=31 // pred_check_branch
          %180 = sbr.rel (%p178) target = $region36
        $region35: #{tpu_custom_call.1} parent=31 // pred_region
          %181 = dma.done %s174, 2048
        $region36: #{tpu_custom_call.1} parent=31 // pred_fallthru
          _
        // Predicated region
        $region37: #{tpu_custom_call.1} parent=31 // pred_check
          %p182 = pneg %p63
        $region38: #{tpu_custom_call.1} parent=31 // pred_check_branch
          %184 = sbr.rel (%p182) target = $region40
        $region39: #{tpu_custom_call.1} parent=31 // pred_region
          %185 = dma.done [#allocation6], 3072
        $region40: #{tpu_custom_call.1} parent=31 // pred_fallthru
          _
        %s186 = sand.u32 %s29, 1
        %s187 = scalar_lea.sflag [#allocation3], %s186
        %s188 = sand.u32 %s29, 1
        %s189 = smul.addr %s188, 128
        %s190 = scalar_lea.vmem [#allocation2], %s189
        %p191 = pneg %p42
        %p192 = pneg %p39
        %p193 = pneg %p63
        %p194 = pneg %p60
        %p195 = pneg %p84
        %p196 = pneg %p81
        %p197 = pneg %p110
        %p198 = pneg %p107
        %s199 = sand.u32 %s97, 1
        %s200 = scalar_lea.sflag [#allocation4], %s199
        %s201 = sand.u32 %s97, 1
        %s202 = smul.addr %s201, 256
        %s203 = scalar_lea.vmem [#allocation7], %s202
        %s204 = smul.u32 32, %s21
        %s205 = smul.u32 32, %s21
        %v207 = vld [vmem:[%s177] sm:$0xf]
        %v208 = vld [vmem:[%s177 + $0x4] sm:$0xf]
        %v209 = vld [vmem:[%s177 + $0x8] sm:$0xf]
        %v210 = vld [vmem:[%s177 + $0xc] sm:$0xf]
        %v211 = vld [vmem:[%s177 + $0x10] sm:$0xf]
        %v212 = vld [vmem:[%s177 + $0x14] sm:$0xf]
        %v213 = vld [vmem:[%s177 + $0x18] sm:$0xf]
        %v214 = vld [vmem:[%s177 + $0x1c] sm:$0xf]
        %v215 = vld [vmem:[%s177 + $0x20] sm:$0xf]
        %v216 = vld [vmem:[%s177 + $0x24] sm:$0xf]
        %v217 = vld [vmem:[%s177 + $0x28] sm:$0xf]
        %v218 = vld [vmem:[%s177 + $0x2c] sm:$0xf]
        %v219 = vld [vmem:[%s177 + $0x30] sm:$0xf]
        %v220 = vld [vmem:[%s177 + $0x34] sm:$0xf]
        %v221 = vld [vmem:[%s177 + $0x38] sm:$0xf]
        %v222 = vld [vmem:[%s177 + $0x3c] sm:$0xf]
        %v223 = vld [vmem:[%s177 + $0x40] sm:$0xf]
        %v224 = vld [vmem:[%s177 + $0x44] sm:$0xf]
        %v225 = vld [vmem:[%s177 + $0x48] sm:$0xf]
        %v226 = vld [vmem:[%s177 + $0x4c] sm:$0xf]
        %v227 = vld [vmem:[%s177 + $0x50] sm:$0xf]
        %v228 = vld [vmem:[%s177 + $0x54] sm:$0xf]
        %v229 = vld [vmem:[%s177 + $0x58] sm:$0xf]
        %v230 = vld [vmem:[%s177 + $0x5c] sm:$0xf]
        %v231 = vld [vmem:[%s177 + $0x60] sm:$0xf]
        %v232 = vld [vmem:[%s177 + $0x64] sm:$0xf]
        %v233 = vld [vmem:[%s177 + $0x68] sm:$0xf]
        %v234 = vld [vmem:[%s177 + $0x6c] sm:$0xf]
        %v235 = vld [vmem:[%s177 + $0x70] sm:$0xf]
        %v236 = vld [vmem:[%s177 + $0x74] sm:$0xf]
        %v237 = vld [vmem:[%s177 + $0x78] sm:$0xf]
        %v238 = vld [vmem:[%s177 + $0x7c] sm:$0xf]
        %v239 = vld [vmem:[#allocation5] sm:$0xff]
        %v240 = vld [vmem:[#allocation5 + $0x8] sm:$0xf]
        %v241 = vld [vmem:[#allocation5 + $0xc] sm:$0xff]
        %v242 = vld [vmem:[#allocation5 + $0x14] sm:$0xf]
        %v243 = vld [vmem:[#allocation5 + $0x18] sm:$0xff]
        %v244 = vld [vmem:[#allocation5 + $0x20] sm:$0xf]
        %v245 = vld [vmem:[#allocation5 + $0x24] sm:$0xff]
        %v246 = vld [vmem:[#allocation5 + $0x2c] sm:$0xf]
        %v247 = vld [vmem:[#allocation5 + $0x30] sm:$0xff]
        %v248 = vld [vmem:[#allocation5 + $0x38] sm:$0xf]
        %v249 = vld [vmem:[#allocation5 + $0x3c] sm:$0xff]
        %v250 = vld [vmem:[#allocation5 + $0x44] sm:$0xf]
        %v251 = vld [vmem:[#allocation5 + $0x48] sm:$0xff]
        %v252 = vld [vmem:[#allocation5 + $0x50] sm:$0xf]
        %v253 = vld [vmem:[#allocation5 + $0x54] sm:$0xff]
        %v254 = vld [vmem:[#allocation5 + $0x5c] sm:$0xf]
        %v255 = vld [vmem:[#allocation5 + $0x60] sm:$0xff]
        %v256 = vld [vmem:[#allocation5 + $0x68] sm:$0xf]
        %v257 = vld [vmem:[#allocation5 + $0x6c] sm:$0xff]
        %v258 = vld [vmem:[#allocation5 + $0x74] sm:$0xf]
        %v259 = vld [vmem:[#allocation5 + $0x78] sm:$0xff]
        %v260 = vld [vmem:[#allocation5 + $0x80] sm:$0xf]
        %v261 = vld [vmem:[#allocation5 + $0x84] sm:$0xff]
        %v262 = vld [vmem:[#allocation5 + $0x8c] sm:$0xf]
        %v263 = vld [vmem:[#allocation5 + $0x90] sm:$0xff]
        %v264 = vld [vmem:[#allocation5 + $0x98] sm:$0xf]
        %v265 = vld [vmem:[#allocation5 + $0x9c] sm:$0xff]
        %v266 = vld [vmem:[#allocation5 + $0xa4] sm:$0xf]
        %v267 = vld [vmem:[#allocation5 + $0xa8] sm:$0xff]
        %v268 = vld [vmem:[#allocation5 + $0xb0] sm:$0xf]
        %v269 = vld [vmem:[#allocation5 + $0xb4] sm:$0xff]
        %v270 = vld [vmem:[#allocation5 + $0xbc] sm:$0xf]
        %v271 = vld [vmem:[%s2] sm:$0x7]
        %v273 = vlaneseq
        %v274 = vshrl.u32 %v273, 7
        %v275 = vsub.s32 0, %v274
        %v276 = vrot.slane %v271, %v275
        %v277 = vlaneseq
        %v278 = vshrl.u32 %v277, 7
        %v279 = vsub.s32 1, %v278
        %v280 = vrot.slane %v271, %v279
        %v281 = vlaneseq
        %v282 = vshrl.u32 %v281, 7
        %v283 = vsub.s32 2, %v282
        %v284 = vrot.slane %v271, %v283
        %v320 = vunpack.c.l.b16 %v207
        %v321 = vunpack.c.l.b16 %v208
        %v322 = vunpack.c.l.b16 %v209
        %v323 = vunpack.c.l.b16 %v210
        %v324 = vunpack.c.l.b16 %v211
        %v325 = vunpack.c.l.b16 %v212
        %v326 = vunpack.c.l.b16 %v213
        %v327 = vunpack.c.l.b16 %v214
        %v328 = vunpack.c.l.b16 %v215
        %v329 = vunpack.c.l.b16 %v216
        %v330 = vunpack.c.l.b16 %v217
        %v331 = vunpack.c.l.b16 %v218
        %v332 = vunpack.c.l.b16 %v219
        %v333 = vunpack.c.l.b16 %v220
        %v334 = vunpack.c.l.b16 %v221
        %v335 = vunpack.c.l.b16 %v222
        %v336 = vunpack.c.l.b16 %v223
        %v337 = vunpack.c.l.b16 %v224
        %v338 = vunpack.c.l.b16 %v225
        %v339 = vunpack.c.l.b16 %v226
        %v340 = vunpack.c.l.b16 %v227
        %v341 = vunpack.c.l.b16 %v228
        %v342 = vunpack.c.l.b16 %v229
        %v343 = vunpack.c.l.b16 %v230
        %v344 = vunpack.c.l.b16 %v231
        %v345 = vunpack.c.l.b16 %v232
        %v346 = vunpack.c.l.b16 %v233
        %v347 = vunpack.c.l.b16 %v234
        %v348 = vunpack.c.l.b16 %v235
        %v349 = vunpack.c.l.b16 %v236
        %v350 = vunpack.c.l.b16 %v237
        %v351 = vunpack.c.l.b16 %v238
        %v352 = vpack.c.b16 %v321, %v320
        %v353 = vpack.c.b16 %v323, %v322
        %v354 = vpack.c.b16 %v325, %v324
        %v355 = vpack.c.b16 %v327, %v326
        %v356 = vpack.c.b16 %v329, %v328
        %v357 = vpack.c.b16 %v331, %v330
        %v358 = vpack.c.b16 %v333, %v332
        %v359 = vpack.c.b16 %v335, %v334
        %v360 = vpack.c.b16 %v337, %v336
        %v361 = vpack.c.b16 %v339, %v338
        %v362 = vpack.c.b16 %v341, %v340
        %v363 = vpack.c.b16 %v343, %v342
        %v364 = vpack.c.b16 %v345, %v344
        %v365 = vpack.c.b16 %v347, %v346
        %v366 = vpack.c.b16 %v349, %v348
        %v367 = vpack.c.b16 %v351, %v350
        %v416 = vunpack.c.l.b16 %v239
        %v417 = vunpack.c.h.b16 %v239
        %v418 = vunpack.c.l.b16 %v240
        %v419 = vunpack.c.l.b16 %v241
        %v420 = vunpack.c.h.b16 %v241
        %v421 = vunpack.c.l.b16 %v242
        %v422 = vunpack.c.l.b16 %v243
        %v423 = vunpack.c.h.b16 %v243
        %v424 = vunpack.c.l.b16 %v244
        %v425 = vunpack.c.l.b16 %v245
        %v426 = vunpack.c.h.b16 %v245
        %v427 = vunpack.c.l.b16 %v246
        %v428 = vunpack.c.l.b16 %v247
        %v429 = vunpack.c.h.b16 %v247
        %v430 = vunpack.c.l.b16 %v248
        %v431 = vunpack.c.l.b16 %v249
        %v432 = vunpack.c.h.b16 %v249
        %v433 = vunpack.c.l.b16 %v250
        %v434 = vunpack.c.l.b16 %v251
        %v435 = vunpack.c.h.b16 %v251
        %v436 = vunpack.c.l.b16 %v252
        %v437 = vunpack.c.l.b16 %v253
        %v438 = vunpack.c.h.b16 %v253
        %v439 = vunpack.c.l.b16 %v254
        %v440 = vunpack.c.l.b16 %v255
        %v441 = vunpack.c.h.b16 %v255
        %v442 = vunpack.c.l.b16 %v256
        %v443 = vunpack.c.l.b16 %v257
        %v444 = vunpack.c.h.b16 %v257
        %v445 = vunpack.c.l.b16 %v258
        %v446 = vunpack.c.l.b16 %v259
        %v447 = vunpack.c.h.b16 %v259
        %v448 = vunpack.c.l.b16 %v260
        %v449 = vunpack.c.l.b16 %v261
        %v450 = vunpack.c.h.b16 %v261
        %v451 = vunpack.c.l.b16 %v262
        %v452 = vunpack.c.l.b16 %v263
        %v453 = vunpack.c.h.b16 %v263
        %v454 = vunpack.c.l.b16 %v264
        %v455 = vunpack.c.l.b16 %v265
        %v456 = vunpack.c.h.b16 %v265
        %v457 = vunpack.c.l.b16 %v266
        %v458 = vunpack.c.l.b16 %v267
        %v459 = vunpack.c.h.b16 %v267
        %v460 = vunpack.c.l.b16 %v268
        %v461 = vunpack.c.l.b16 %v269
        %v462 = vunpack.c.h.b16 %v269
        %v463 = vunpack.c.l.b16 %v270
        %v464 = vpack.c.b16 %v419, %v416
        %v465 = vpack.c.b16 %v420, %v417
        %v466 = vpack.c.b16 %v421, %v418
        %v467 = vpack.c.b16 %v425, %v422
        %v468 = vpack.c.b16 %v426, %v423
        %v469 = vpack.c.b16 %v427, %v424
        %v470 = vpack.c.b16 %v431, %v428
        %v471 = vpack.c.b16 %v432, %v429
        %v472 = vpack.c.b16 %v433, %v430
        %v473 = vpack.c.b16 %v437, %v434
        %v474 = vpack.c.b16 %v438, %v435
        %v475 = vpack.c.b16 %v439, %v436
        %v476 = vpack.c.b16 %v443, %v440
        %v477 = vpack.c.b16 %v444, %v441
        %v478 = vpack.c.b16 %v445, %v442
        %v479 = vpack.c.b16 %v449, %v446
        %v480 = vpack.c.b16 %v450, %v447
        %v481 = vpack.c.b16 %v451, %v448
        %v482 = vpack.c.b16 %v455, %v452
        %v483 = vpack.c.b16 %v456, %v453
        %v484 = vpack.c.b16 %v457, %v454
        %v485 = vpack.c.b16 %v461, %v458
        %v486 = vpack.c.b16 %v462, %v459
        %v487 = vpack.c.b16 %v463, %v460
        %512 = vmatprep.subr.bf16.mxu0 %v486
        %513 = vmatpush1.bf16.msra.mxu0 %v485
        %514 = vmatprep.subr.bf16.mxu0 %v483
        %515 = vmatpush1.bf16.msra.mxu0 %v482
        %516 = vmatprep.subr.bf16.mxu0 %v480
        %517 = vmatpush1.bf16.msra.mxu0 %v479
        %518 = vmatprep.subr.bf16.mxu0 %v477
        %519 = vmatpush1.bf16.msra.mxu0 %v476
        %520 = vmatprep.subr.bf16.mxu0 %v474
        %521 = vmatpush1.bf16.msra.mxu0 %v473
        %522 = vmatprep.subr.bf16.mxu0 %v471
        %523 = vmatpush1.bf16.msra.mxu0 %v470
        %524 = vmatprep.subr.bf16.mxu0 %v468
        %525 = vmatpush1.bf16.msra.mxu0 %v467
        %526 = vmatprep.subr.bf16.mxu0 %v465
        %527 = vmatpush1.bf16.msra.mxu0 %v464
        %528 = vmatprep.subr.bf16.mxu0 0
        %529 = vmatpush2.bf16.msra.mxu0 0
        %530 = vmatprep.subr.bf16.mxu0 0
        %531 = vmatpush2.bf16.msra.mxu0 0
        %532 = vmatprep.subr.bf16.mxu0 0
        %533 = vmatpush2.bf16.msra.mxu0 0
        %534 = vmatprep.subr.bf16.mxu0 0
        %535 = vmatpush2.bf16.msra.mxu0 0
        %536 = vmatprep.subr.bf16.mxu0 0
        %537 = vmatpush2.bf16.msra.mxu0 0
        %538 = vmatprep.subr.bf16.mxu0 0
        %539 = vmatpush2.bf16.msra.mxu0 0
        %540 = vmatprep.subr.bf16.mxu0 0
        %541 = vmatpush2.bf16.msra.mxu0 0
        %542 = vmatprep.subr.bf16.mxu0 0
        %543 = vmatpush2.bf16.msra.mxu0 0
        %544 = vmatprep.mubr.bf16.mxu0 0
        %545 = vmatmul.mubr.bf16.gmra.mxu0 %v352
        %v546 = vpop.f32.mrf.mxu0
        %v547 = vadd.f32 %v276, %v546
        %v548 = vpop.f32.mrf.mxu0
        %v549 = vadd.f32 %v280, %v548
        %v550 = vpop.f32.mrf.mxu0
        %v551 = vadd.f32 %v276, %v550
        %v552 = vpop.f32.mrf.mxu0
        %v553 = vadd.f32 %v280, %v552
        %554 = vmatprep.mubr.bf16.mxu0 0
        %555 = vmatmul.mubr.bf16.gmra.mxu0 %v353
        %v556 = vpop.f32.mrf.mxu0
        %v557 = vadd.f32 %v276, %v556
        %v558 = vpop.f32.mrf.mxu0
        %v559 = vadd.f32 %v280, %v558
        %v560 = vpop.f32.mrf.mxu0
        %v561 = vadd.f32 %v276, %v560
        %v562 = vpop.f32.mrf.mxu0
        %v563 = vadd.f32 %v280, %v562
        %564 = vmatprep.mubr.bf16.mxu0 0
        %565 = vmatmul.mubr.bf16.gmra.mxu0 %v354
        %v566 = vpop.f32.mrf.mxu0
        %v567 = vadd.f32 %v276, %v566
        %v568 = vpop.f32.mrf.mxu0
        %v569 = vadd.f32 %v280, %v568
        %v570 = vpop.f32.mrf.mxu0
        %v571 = vadd.f32 %v276, %v570
        %v572 = vpop.f32.mrf.mxu0
        %v573 = vadd.f32 %v280, %v572
        %574 = vmatprep.mubr.bf16.mxu0 0
        %575 = vmatmul.mubr.bf16.gmra.mxu0 %v355
        %v576 = vpop.f32.mrf.mxu0
        %v577 = vadd.f32 %v276, %v576
        %v578 = vpop.f32.mrf.mxu0
        %v579 = vadd.f32 %v280, %v578
        %v580 = vpop.f32.mrf.mxu0
        %v581 = vadd.f32 %v276, %v580
        %v582 = vpop.f32.mrf.mxu0
        %v583 = vadd.f32 %v280, %v582
        %584 = vmatprep.mubr.bf16.mxu0 0
        %585 = vmatmul.mubr.bf16.gmra.mxu0 %v356
        %v586 = vpop.f32.mrf.mxu0
        %v587 = vadd.f32 %v276, %v586
        %v588 = vpop.f32.mrf.mxu0
        %v589 = vadd.f32 %v280, %v588
        %v590 = vpop.f32.mrf.mxu0
        %v591 = vadd.f32 %v276, %v590
        %v592 = vpop.f32.mrf.mxu0
        %v593 = vadd.f32 %v280, %v592
        %594 = vmatprep.mubr.bf16.mxu0 0
        %595 = vmatmul.mubr.bf16.gmra.mxu0 %v357
        %v596 = vpop.f32.mrf.mxu0
        %v597 = vadd.f32 %v276, %v596
        %v598 = vpop.f32.mrf.mxu0
        %v599 = vadd.f32 %v280, %v598
        %v600 = vpop.f32.mrf.mxu0
        %v601 = vadd.f32 %v276, %v600
        %v602 = vpop.f32.mrf.mxu0
        %v603 = vadd.f32 %v280, %v602
        %604 = vmatprep.mubr.bf16.mxu0 0
        %605 = vmatmul.mubr.bf16.gmra.mxu0 %v358
        %v606 = vpop.f32.mrf.mxu0
        %v607 = vadd.f32 %v276, %v606
        %v608 = vpop.f32.mrf.mxu0
        %v609 = vadd.f32 %v280, %v608
        %v610 = vpop.f32.mrf.mxu0
        %v611 = vadd.f32 %v276, %v610
        %v612 = vpop.f32.mrf.mxu0
        %v613 = vadd.f32 %v280, %v612
        %614 = vmatprep.mubr.bf16.mxu0 0
        %615 = vmatmul.mubr.bf16.gmra.mxu0 %v359
        %v616 = vpop.f32.mrf.mxu0
        %v617 = vadd.f32 %v276, %v616
        %v618 = vpop.f32.mrf.mxu0
        %v619 = vadd.f32 %v280, %v618
        %v620 = vpop.f32.mrf.mxu0
        %v621 = vadd.f32 %v276, %v620
        %v622 = vpop.f32.mrf.mxu0
        %v623 = vadd.f32 %v280, %v622
        %624 = vmatprep.mubr.bf16.mxu0 0
        %625 = vmatmul.mubr.bf16.gmra.mxu0 %v360
        %v626 = vpop.f32.mrf.mxu0
        %v627 = vadd.f32 %v276, %v626
        %v628 = vpop.f32.mrf.mxu0
        %v629 = vadd.f32 %v280, %v628
        %v630 = vpop.f32.mrf.mxu0
        %v631 = vadd.f32 %v276, %v630
        %v632 = vpop.f32.mrf.mxu0
        %v633 = vadd.f32 %v280, %v632
        %634 = vmatprep.mubr.bf16.mxu0 0
        %635 = vmatmul.mubr.bf16.gmra.mxu0 %v361
        %v636 = vpop.f32.mrf.mxu0
        %v637 = vadd.f32 %v276, %v636
        %v638 = vpop.f32.mrf.mxu0
        %v639 = vadd.f32 %v280, %v638
        %v640 = vpop.f32.mrf.mxu0
        %v641 = vadd.f32 %v276, %v640
        %v642 = vpop.f32.mrf.mxu0
        %v643 = vadd.f32 %v280, %v642
        %644 = vmatprep.mubr.bf16.mxu0 0
        %645 = vmatmul.mubr.bf16.gmra.mxu0 %v362
        %v646 = vpop.f32.mrf.mxu0
        %v647 = vadd.f32 %v276, %v646
        %v648 = vpop.f32.mrf.mxu0
        %v649 = vadd.f32 %v280, %v648
        %v650 = vpop.f32.mrf.mxu0
        %v651 = vadd.f32 %v276, %v650
        %v652 = vpop.f32.mrf.mxu0
        %v653 = vadd.f32 %v280, %v652
        %654 = vmatprep.mubr.bf16.mxu0 0
        %655 = vmatmul.mubr.bf16.gmra.mxu0 %v363
        %v656 = vpop.f32.mrf.mxu0
        %v657 = vadd.f32 %v276, %v656
        %v658 = vpop.f32.mrf.mxu0
        %v659 = vadd.f32 %v280, %v658
        %v660 = vpop.f32.mrf.mxu0
        %v661 = vadd.f32 %v276, %v660
        %v662 = vpop.f32.mrf.mxu0
        %v663 = vadd.f32 %v280, %v662
        %664 = vmatprep.mubr.bf16.mxu0 0
        %665 = vmatmul.mubr.bf16.gmra.mxu0 %v364
        %v666 = vpop.f32.mrf.mxu0
        %v667 = vadd.f32 %v276, %v666
        %v668 = vpop.f32.mrf.mxu0
        %v669 = vadd.f32 %v280, %v668
        %v670 = vpop.f32.mrf.mxu0
        %v671 = vadd.f32 %v276, %v670
        %v672 = vpop.f32.mrf.mxu0
        %v673 = vadd.f32 %v280, %v672
        %674 = vmatprep.mubr.bf16.mxu0 0
        %675 = vmatmul.mubr.bf16.gmra.mxu0 %v365
        %v676 = vpop.f32.mrf.mxu0
        %v677 = vadd.f32 %v276, %v676
        %v678 = vpop.f32.mrf.mxu0
        %v679 = vadd.f32 %v280, %v678
        %v680 = vpop.f32.mrf.mxu0
        %v681 = vadd.f32 %v276, %v680
        %v682 = vpop.f32.mrf.mxu0
        %v683 = vadd.f32 %v280, %v682
        %684 = vmatprep.mubr.bf16.mxu0 0
        %685 = vmatmul.mubr.bf16.gmra.mxu0 %v366
        %v686 = vpop.f32.mrf.mxu0
        %v687 = vadd.f32 %v276, %v686
        %v688 = vpop.f32.mrf.mxu0
        %v689 = vadd.f32 %v280, %v688
        %v690 = vpop.f32.mrf.mxu0
        %v691 = vadd.f32 %v276, %v690
        %v692 = vpop.f32.mrf.mxu0
        %v693 = vadd.f32 %v280, %v692
        %694 = vmatprep.mubr.bf16.mxu0 0
        %695 = vmatmul.mubr.bf16.gmra.mxu0 %v367
        %v696 = vpop.f32.mrf.mxu0
        %v697 = vadd.f32 %v276, %v696
        %v698 = vpop.f32.mrf.mxu0
        %v699 = vadd.f32 %v280, %v698
        %v700 = vpop.f32.mrf.mxu0
        %v701 = vadd.f32 %v276, %v700
        %v702 = vpop.f32.mrf.mxu0
        %v703 = vadd.f32 %v280, %v702
        %704 = vdwg.mxu0
        %705 = vmatprep.subr.bf16.mxu0 0
        %706 = vmatpush1.bf16.msra.mxu0 %v487
        %707 = vmatprep.subr.bf16.mxu0 0
        %708 = vmatpush1.bf16.msra.mxu0 %v484
        %709 = vmatprep.subr.bf16.mxu0 0
        %710 = vmatpush1.bf16.msra.mxu0 %v481
        %711 = vmatprep.subr.bf16.mxu0 0
        %712 = vmatpush1.bf16.msra.mxu0 %v478
        %713 = vmatprep.subr.bf16.mxu0 0
        %714 = vmatpush1.bf16.msra.mxu0 %v475
        %715 = vmatprep.subr.bf16.mxu0 0
        %716 = vmatpush1.bf16.msra.mxu0 %v472
        %717 = vmatprep.subr.bf16.mxu0 0
        %718 = vmatpush1.bf16.msra.mxu0 %v469
        %719 = vmatprep.subr.bf16.mxu0 0
        %720 = vmatpush1.bf16.msra.mxu0 %v466
        %721 = vmatprep.subr.bf16.mxu0 0
        %722 = vmatpush2.bf16.msra.mxu0 0
        %723 = vmatprep.subr.bf16.mxu0 0
        %724 = vmatpush2.bf16.msra.mxu0 0
        %725 = vmatprep.subr.bf16.mxu0 0
        %726 = vmatpush2.bf16.msra.mxu0 0
        %727 = vmatprep.subr.bf16.mxu0 0
        %728 = vmatpush2.bf16.msra.mxu0 0
        %729 = vmatprep.subr.bf16.mxu0 0
        %730 = vmatpush2.bf16.msra.mxu0 0
        %731 = vmatprep.subr.bf16.mxu0 0
        %732 = vmatpush2.bf16.msra.mxu0 0
        %733 = vmatprep.subr.bf16.mxu0 0
        %734 = vmatpush2.bf16.msra.mxu0 0
        %735 = vmatprep.subr.bf16.mxu0 0
        %736 = vmatpush2.bf16.msra.mxu0 0
        %737 = vmatprep.mubr.bf16.mxu0 0
        %738 = vmatmul.mubr.bf16.gmra.mxu0 %v352
        %v739 = vpop.f32.mrf.mxu0
        %v740 = vadd.f32 %v284, %v739
        %v741 = vpop.f32.mrf.mxu0
        %v742 = vpop.f32.mrf.mxu0
        %v743 = vadd.f32 %v284, %v742
        %v744 = vpop.f32.mrf.mxu0
        %745 = vmatprep.mubr.bf16.mxu0 0
        %746 = vmatmul.mubr.bf16.gmra.mxu0 %v353
        %v747 = vpop.f32.mrf.mxu0
        %v748 = vadd.f32 %v284, %v747
        %v749 = vpop.f32.mrf.mxu0
        %v750 = vpop.f32.mrf.mxu0
        %v751 = vadd.f32 %v284, %v750
        %v752 = vpop.f32.mrf.mxu0
        %753 = vmatprep.mubr.bf16.mxu0 0
        %754 = vmatmul.mubr.bf16.gmra.mxu0 %v354
        %v755 = vpop.f32.mrf.mxu0
        %v756 = vadd.f32 %v284, %v755
        %v757 = vpop.f32.mrf.mxu0
        %v758 = vpop.f32.mrf.mxu0
        %v759 = vadd.f32 %v284, %v758
        %v760 = vpop.f32.mrf.mxu0
        %761 = vmatprep.mubr.bf16.mxu0 0
        %762 = vmatmul.mubr.bf16.gmra.mxu0 %v355
        %v763 = vpop.f32.mrf.mxu0
        %v764 = vadd.f32 %v284, %v763
        %v765 = vpop.f32.mrf.mxu0
        %v766 = vpop.f32.mrf.mxu0
        %v767 = vadd.f32 %v284, %v766
        %v768 = vpop.f32.mrf.mxu0
        %769 = vmatprep.mubr.bf16.mxu0 0
        %770 = vmatmul.mubr.bf16.gmra.mxu0 %v356
        %v771 = vpop.f32.mrf.mxu0
        %v772 = vadd.f32 %v284, %v771
        %v773 = vpop.f32.mrf.mxu0
        %v774 = vpop.f32.mrf.mxu0
        %v775 = vadd.f32 %v284, %v774
        %v776 = vpop.f32.mrf.mxu0
        %777 = vmatprep.mubr.bf16.mxu0 0
        %778 = vmatmul.mubr.bf16.gmra.mxu0 %v357
        %v779 = vpop.f32.mrf.mxu0
        %v780 = vadd.f32 %v284, %v779
        %v781 = vpop.f32.mrf.mxu0
        %v782 = vpop.f32.mrf.mxu0
        %v783 = vadd.f32 %v284, %v782
        %v784 = vpop.f32.mrf.mxu0
        %785 = vmatprep.mubr.bf16.mxu0 0
        %786 = vmatmul.mubr.bf16.gmra.mxu0 %v358
        %v787 = vpop.f32.mrf.mxu0
        %v788 = vadd.f32 %v284, %v787
        %v789 = vpop.f32.mrf.mxu0
        %v790 = vpop.f32.mrf.mxu0
        %v791 = vadd.f32 %v284, %v790
        %v792 = vpop.f32.mrf.mxu0
        %793 = vmatprep.mubr.bf16.mxu0 0
        %794 = vmatmul.mubr.bf16.gmra.mxu0 %v359
        %v795 = vpop.f32.mrf.mxu0
        %v796 = vadd.f32 %v284, %v795
        %v797 = vpop.f32.mrf.mxu0
        %v798 = vpop.f32.mrf.mxu0
        %v799 = vadd.f32 %v284, %v798
        %v800 = vpop.f32.mrf.mxu0
        %801 = vmatprep.mubr.bf16.mxu0 0
        %802 = vmatmul.mubr.bf16.gmra.mxu0 %v360
        %v803 = vpop.f32.mrf.mxu0
        %v804 = vadd.f32 %v284, %v803
        %v805 = vpop.f32.mrf.mxu0
        %v806 = vpop.f32.mrf.mxu0
        %v807 = vadd.f32 %v284, %v806
        %v808 = vpop.f32.mrf.mxu0
        %809 = vmatprep.mubr.bf16.mxu0 0
        %810 = vmatmul.mubr.bf16.gmra.mxu0 %v361
        %v811 = vpop.f32.mrf.mxu0
        %v812 = vadd.f32 %v284, %v811
        %v813 = vpop.f32.mrf.mxu0
        %v814 = vpop.f32.mrf.mxu0
        %v815 = vadd.f32 %v284, %v814
        %v816 = vpop.f32.mrf.mxu0
        %817 = vmatprep.mubr.bf16.mxu0 0
        %818 = vmatmul.mubr.bf16.gmra.mxu0 %v362
        %v819 = vpop.f32.mrf.mxu0
        %v820 = vadd.f32 %v284, %v819
        %v821 = vpop.f32.mrf.mxu0
        %v822 = vpop.f32.mrf.mxu0
        %v823 = vadd.f32 %v284, %v822
        %v824 = vpop.f32.mrf.mxu0
        %825 = vmatprep.mubr.bf16.mxu0 0
        %826 = vmatmul.mubr.bf16.gmra.mxu0 %v363
        %v827 = vpop.f32.mrf.mxu0
        %v828 = vadd.f32 %v284, %v827
        %v829 = vpop.f32.mrf.mxu0
        %v830 = vpop.f32.mrf.mxu0
        %v831 = vadd.f32 %v284, %v830
        %v832 = vpop.f32.mrf.mxu0
        %833 = vmatprep.mubr.bf16.mxu0 0
        %834 = vmatmul.mubr.bf16.gmra.mxu0 %v364
        %v835 = vpop.f32.mrf.mxu0
        %v836 = vadd.f32 %v284, %v835
        %v837 = vpop.f32.mrf.mxu0
        %v838 = vpop.f32.mrf.mxu0
        %v839 = vadd.f32 %v284, %v838
        %v840 = vpop.f32.mrf.mxu0
        %841 = vmatprep.mubr.bf16.mxu0 0
        %842 = vmatmul.mubr.bf16.gmra.mxu0 %v365
        %v843 = vpop.f32.mrf.mxu0
        %v844 = vadd.f32 %v284, %v843
        %v845 = vpop.f32.mrf.mxu0
        %v846 = vpop.f32.mrf.mxu0
        %v847 = vadd.f32 %v284, %v846
        %v848 = vpop.f32.mrf.mxu0
        %849 = vmatprep.mubr.bf16.mxu0 0
        %850 = vmatmul.mubr.bf16.gmra.mxu0 %v366
        %v851 = vpop.f32.mrf.mxu0
        %v852 = vadd.f32 %v284, %v851
        %v853 = vpop.f32.mrf.mxu0
        %v854 = vpop.f32.mrf.mxu0
        %v855 = vadd.f32 %v284, %v854
        %v856 = vpop.f32.mrf.mxu0
        %857 = vmatprep.mubr.bf16.mxu0 0
        %858 = vmatmul.mubr.bf16.gmra.mxu0 %v367
        %v859 = vpop.f32.mrf.mxu0
        %v860 = vadd.f32 %v284, %v859
        %v861 = vpop.f32.mrf.mxu0
        %v862 = vpop.f32.mrf.mxu0
        %v863 = vadd.f32 %v284, %v862
        %v864 = vpop.f32.mrf.mxu0
        %865 = vdwg.mxu0
        %v866 = vxor.u32 %v740, 2147483648
        %v867 = vxor.u32 %v743, 2147483648
        %v868 = vxor.u32 %v748, 2147483648
        %v869 = vxor.u32 %v751, 2147483648
        %v870 = vxor.u32 %v756, 2147483648
        %v871 = vxor.u32 %v759, 2147483648
        %v872 = vxor.u32 %v764, 2147483648
        %v873 = vxor.u32 %v767, 2147483648
        %v874 = vxor.u32 %v772, 2147483648
        %v875 = vxor.u32 %v775, 2147483648
        %v876 = vxor.u32 %v780, 2147483648
        %v877 = vxor.u32 %v783, 2147483648
        %v878 = vxor.u32 %v788, 2147483648
        %v879 = vxor.u32 %v791, 2147483648
        %v880 = vxor.u32 %v796, 2147483648
        %v881 = vxor.u32 %v799, 2147483648
        %v882 = vxor.u32 %v804, 2147483648
        %v883 = vxor.u32 %v807, 2147483648
        %v884 = vxor.u32 %v812, 2147483648
        %v885 = vxor.u32 %v815, 2147483648
        %v886 = vxor.u32 %v820, 2147483648
        %v887 = vxor.u32 %v823, 2147483648
        %v888 = vxor.u32 %v828, 2147483648
        %v889 = vxor.u32 %v831, 2147483648
        %v890 = vxor.u32 %v836, 2147483648
        %v891 = vxor.u32 %v839, 2147483648
        %v892 = vxor.u32 %v844, 2147483648
        %v893 = vxor.u32 %v847, 2147483648
        %v894 = vxor.u32 %v852, 2147483648
        %v895 = vxor.u32 %v855, 2147483648
        %v896 = vxor.u32 %v860, 2147483648
        %v897 = vxor.u32 %v863, 2147483648
        %v898 = vmul.f32 %v866, 1.442695
        %v899 = vpow.pop %v898
        %v900 = vmul.f32 %v867, 1.442695
        %v901 = vpow.pop %v900
        %v902 = vmul.f32 %v868, 1.442695
        %v903 = vpow.pop %v902
        %v904 = vmul.f32 %v869, 1.442695
        %v905 = vpow.pop %v904
        %v906 = vmul.f32 %v870, 1.442695
        %v907 = vpow.pop %v906
        %v908 = vmul.f32 %v871, 1.442695
        %v909 = vpow.pop %v908
        %v910 = vmul.f32 %v872, 1.442695
        %v911 = vpow.pop %v910
        %v912 = vmul.f32 %v873, 1.442695
        %v913 = vpow.pop %v912
        %v914 = vmul.f32 %v874, 1.442695
        %v915 = vpow.pop %v914
        %v916 = vmul.f32 %v875, 1.442695
        %v917 = vpow.pop %v916
        %v918 = vmul.f32 %v876, 1.442695
        %v919 = vpow.pop %v918
        %v920 = vmul.f32 %v877, 1.442695
        %v921 = vpow.pop %v920
        %v922 = vmul.f32 %v878, 1.442695
        %v923 = vpow.pop %v922
        %v924 = vmul.f32 %v879, 1.442695
        %v925 = vpow.pop %v924
        %v926 = vmul.f32 %v880, 1.442695
        %v927 = vpow.pop %v926
        %v928 = vmul.f32 %v881, 1.442695
        %v929 = vpow.pop %v928
        %v930 = vmul.f32 %v882, 1.442695
        %v931 = vpow.pop %v930
        %v932 = vmul.f32 %v883, 1.442695
        %v933 = vpow.pop %v932
        %v934 = vmul.f32 %v884, 1.442695
        %v935 = vpow.pop %v934
        %v936 = vmul.f32 %v885, 1.442695
        %v937 = vpow.pop %v936
        %v938 = vmul.f32 %v886, 1.442695
        %v939 = vpow.pop %v938
        %v940 = vmul.f32 %v887, 1.442695
        %v941 = vpow.pop %v940
        %v942 = vmul.f32 %v888, 1.442695
        %v943 = vpow.pop %v942
        %v944 = vmul.f32 %v889, 1.442695
        %v945 = vpow.pop %v944
        %v946 = vmul.f32 %v890, 1.442695
        %v947 = vpow.pop %v946
        %v948 = vmul.f32 %v891, 1.442695
        %v949 = vpow.pop %v948
        %v950 = vmul.f32 %v892, 1.442695
        %v951 = vpow.pop %v950
        %v952 = vmul.f32 %v893, 1.442695
        %v953 = vpow.pop %v952
        %v954 = vmul.f32 %v894, 1.442695
        %v955 = vpow.pop %v954
        %v956 = vmul.f32 %v895, 1.442695
        %v957 = vpow.pop %v956
        %v958 = vmul.f32 %v896, 1.442695
        %v959 = vpow.pop %v958
        %v960 = vmul.f32 %v897, 1.442695
        %v961 = vpow.pop %v960
        %v962 = vadd.f32 %v899, 1.0
        %v963 = vadd.f32 %v901, 1.0
        %v964 = vadd.f32 %v903, 1.0
        %v965 = vadd.f32 %v905, 1.0
        %v966 = vadd.f32 %v907, 1.0
        %v967 = vadd.f32 %v909, 1.0
        %v968 = vadd.f32 %v911, 1.0
        %v969 = vadd.f32 %v913, 1.0
        %v970 = vadd.f32 %v915, 1.0
        %v971 = vadd.f32 %v917, 1.0
        %v972 = vadd.f32 %v919, 1.0
        %v973 = vadd.f32 %v921, 1.0
        %v974 = vadd.f32 %v923, 1.0
        %v975 = vadd.f32 %v925, 1.0
        %v976 = vadd.f32 %v927, 1.0
        %v977 = vadd.f32 %v929, 1.0
        %v978 = vadd.f32 %v931, 1.0
        %v979 = vadd.f32 %v933, 1.0
        %v980 = vadd.f32 %v935, 1.0
        %v981 = vadd.f32 %v937, 1.0
        %v982 = vadd.f32 %v939, 1.0
        %v983 = vadd.f32 %v941, 1.0
        %v984 = vadd.f32 %v943, 1.0
        %v985 = vadd.f32 %v945, 1.0
        %v986 = vadd.f32 %v947, 1.0
        %v987 = vadd.f32 %v949, 1.0
        %v988 = vadd.f32 %v951, 1.0
        %v989 = vadd.f32 %v953, 1.0
        %v990 = vadd.f32 %v955, 1.0
        %v991 = vadd.f32 %v957, 1.0
        %v992 = vadd.f32 %v959, 1.0
        %v993 = vadd.f32 %v961, 1.0
        %v994 = vrcp.pop %v962
        %v995 = vmul.f32 1.0, %v994
        %v996 = vrcp.pop %v963
        %v997 = vmul.f32 1.0, %v996
        %v998 = vrcp.pop %v964
        %v999 = vmul.f32 1.0, %v998
        %v1000 = vrcp.pop %v965
        %v1001 = vmul.f32 1.0, %v1000
        %v1002 = vrcp.pop %v966
        %v1003 = vmul.f32 1.0, %v1002
        %v1004 = vrcp.pop %v967
        %v1005 = vmul.f32 1.0, %v1004
        %v1006 = vrcp.pop %v968
        %v1007 = vmul.f32 1.0, %v1006
        %v1008 = vrcp.pop %v969
        %v1009 = vmul.f32 1.0, %v1008
        %v1010 = vrcp.pop %v970
        %v1011 = vmul.f32 1.0, %v1010
        %v1012 = vrcp.pop %v971
        %v1013 = vmul.f32 1.0, %v1012
        %v1014 = vrcp.pop %v972
        %v1015 = vmul.f32 1.0, %v1014
        %v1016 = vrcp.pop %v973
        %v1017 = vmul.f32 1.0, %v1016
        %v1018 = vrcp.pop %v974
        %v1019 = vmul.f32 1.0, %v1018
        %v1020 = vrcp.pop %v975
        %v1021 = vmul.f32 1.0, %v1020
        %v1022 = vrcp.pop %v976
        %v1023 = vmul.f32 1.0, %v1022
        %v1024 = vrcp.pop %v977
        %v1025 = vmul.f32 1.0, %v1024
        %v1026 = vrcp.pop %v978
        %v1027 = vmul.f32 1.0, %v1026
        %v1028 = vrcp.pop %v979
        %v1029 = vmul.f32 1.0, %v1028
        %v1030 = vrcp.pop %v980
        %v1031 = vmul.f32 1.0, %v1030
        %v1032 = vrcp.pop %v981
        %v1033 = vmul.f32 1.0, %v1032
        %v1034 = vrcp.pop %v982
        %v1035 = vmul.f32 1.0, %v1034
        %v1036 = vrcp.pop %v983
        %v1037 = vmul.f32 1.0, %v1036
        %v1038 = vrcp.pop %v984
        %v1039 = vmul.f32 1.0, %v1038
        %v1040 = vrcp.pop %v985
        %v1041 = vmul.f32 1.0, %v1040
        %v1042 = vrcp.pop %v986
        %v1043 = vmul.f32 1.0, %v1042
        %v1044 = vrcp.pop %v987
        %v1045 = vmul.f32 1.0, %v1044
        %v1046 = vrcp.pop %v988
        %v1047 = vmul.f32 1.0, %v1046
        %v1048 = vrcp.pop %v989
        %v1049 = vmul.f32 1.0, %v1048
        %v1050 = vrcp.pop %v990
        %v1051 = vmul.f32 1.0, %v1050
        %v1052 = vrcp.pop %v991
        %v1053 = vmul.f32 1.0, %v1052
        %v1054 = vrcp.pop %v992
        %v1055 = vmul.f32 1.0, %v1054
        %v1056 = vrcp.pop %v993
        %v1057 = vmul.f32 1.0, %v1056
        %v1058 = vmul.f32 %v549, %v995
        %v1059 = vmul.f32 %v553, %v997
        %v1060 = vmul.f32 %v559, %v999
        %v1061 = vmul.f32 %v563, %v1001
        %v1062 = vmul.f32 %v569, %v1003
        %v1063 = vmul.f32 %v573, %v1005
        %v1064 = vmul.f32 %v579, %v1007
        %v1065 = vmul.f32 %v583, %v1009
        %v1066 = vmul.f32 %v589, %v1011
        %v1067 = vmul.f32 %v593, %v1013
        %v1068 = vmul.f32 %v599, %v1015
        %v1069 = vmul.f32 %v603, %v1017
        %v1070 = vmul.f32 %v609, %v1019
        %v1071 = vmul.f32 %v613, %v1021
        %v1072 = vmul.f32 %v619, %v1023
        %v1073 = vmul.f32 %v623, %v1025
        %v1074 = vmul.f32 %v629, %v1027
        %v1075 = vmul.f32 %v633, %v1029
        %v1076 = vmul.f32 %v639, %v1031
        %v1077 = vmul.f32 %v643, %v1033
        %v1078 = vmul.f32 %v649, %v1035
        %v1079 = vmul.f32 %v653, %v1037
        %v1080 = vmul.f32 %v659, %v1039
        %v1081 = vmul.f32 %v663, %v1041
        %v1082 = vmul.f32 %v669, %v1043
        %v1083 = vmul.f32 %v673, %v1045
        %v1084 = vmul.f32 %v679, %v1047
        %v1085 = vmul.f32 %v683, %v1049
        %v1086 = vmul.f32 %v689, %v1051
        %v1087 = vmul.f32 %v693, %v1053
        %v1088 = vmul.f32 %v699, %v1055
        %v1089 = vmul.f32 %v703, %v1057
        %v1090 = vadd.f32 %v547, %v1058
        %v1091 = vadd.f32 %v551, %v1059
        %v1092 = vadd.f32 %v557, %v1060
        %v1093 = vadd.f32 %v561, %v1061
        %v1094 = vadd.f32 %v567, %v1062
        %v1095 = vadd.f32 %v571, %v1063
        %v1096 = vadd.f32 %v577, %v1064
        %v1097 = vadd.f32 %v581, %v1065
        %v1098 = vadd.f32 %v587, %v1066
        %v1099 = vadd.f32 %v591, %v1067
        %v1100 = vadd.f32 %v597, %v1068
        %v1101 = vadd.f32 %v601, %v1069
        %v1102 = vadd.f32 %v607, %v1070
        %v1103 = vadd.f32 %v611, %v1071
        %v1104 = vadd.f32 %v617, %v1072
        %v1105 = vadd.f32 %v621, %v1073
        %v1106 = vadd.f32 %v627, %v1074
        %v1107 = vadd.f32 %v631, %v1075
        %v1108 = vadd.f32 %v637, %v1076
        %v1109 = vadd.f32 %v641, %v1077
        %v1110 = vadd.f32 %v647, %v1078
        %v1111 = vadd.f32 %v651, %v1079
        %v1112 = vadd.f32 %v657, %v1080
        %v1113 = vadd.f32 %v661, %v1081
        %v1114 = vadd.f32 %v667, %v1082
        %v1115 = vadd.f32 %v671, %v1083
        %v1116 = vadd.f32 %v677, %v1084
        %v1117 = vadd.f32 %v681, %v1085
        %v1118 = vadd.f32 %v687, %v1086
        %v1119 = vadd.f32 %v691, %v1087
        %v1120 = vadd.f32 %v697, %v1088
        %v1121 = vadd.f32 %v701, %v1089
        %1122 = vst [vmem:[%s203] sm:$0xff] %v1090
        %1123 = vst [vmem:[%s203 + $0x8] sm:$0xff] %v1091
        %1124 = vst [vmem:[%s203 + $0x10] sm:$0xff] %v1092
        %1125 = vst [vmem:[%s203 + $0x18] sm:$0xff] %v1093
        %1126 = vst [vmem:[%s203 + $0x20] sm:$0xff] %v1094
        %1127 = vst [vmem:[%s203 + $0x28] sm:$0xff] %v1095
        %1128 = vst [vmem:[%s203 + $0x30] sm:$0xff] %v1096
        %1129 = vst [vmem:[%s203 + $0x38] sm:$0xff] %v1097
        %1130 = vst [vmem:[%s203 + $0x40] sm:$0xff] %v1098
        %1131 = vst [vmem:[%s203 + $0x48] sm:$0xff] %v1099
        %1132 = vst [vmem:[%s203 + $0x50] sm:$0xff] %v1100
        %1133 = vst [vmem:[%s203 + $0x58] sm:$0xff] %v1101
        %1134 = vst [vmem:[%s203 + $0x60] sm:$0xff] %v1102
        %1135 = vst [vmem:[%s203 + $0x68] sm:$0xff] %v1103
        %1136 = vst [vmem:[%s203 + $0x70] sm:$0xff] %v1104
        %1137 = vst [vmem:[%s203 + $0x78] sm:$0xff] %v1105
        %1138 = vst [vmem:[%s203 + $0x80] sm:$0xff] %v1106
        %1139 = vst [vmem:[%s203 + $0x88] sm:$0xff] %v1107
        %1140 = vst [vmem:[%s203 + $0x90] sm:$0xff] %v1108
        %1141 = vst [vmem:[%s203 + $0x98] sm:$0xff] %v1109
        %1142 = vst [vmem:[%s203 + $0xa0] sm:$0xff] %v1110
        %1143 = vst [vmem:[%s203 + $0xa8] sm:$0xff] %v1111
        %1144 = vst [vmem:[%s203 + $0xb0] sm:$0xff] %v1112
        %1145 = vst [vmem:[%s203 + $0xb8] sm:$0xff] %v1113
        %1146 = vst [vmem:[%s203 + $0xc0] sm:$0xff] %v1114
        %1147 = vst [vmem:[%s203 + $0xc8] sm:$0xff] %v1115
        %1148 = vst [vmem:[%s203 + $0xd0] sm:$0xff] %v1116
        %1149 = vst [vmem:[%s203 + $0xd8] sm:$0xff] %v1117
        %1150 = vst [vmem:[%s203 + $0xe0] sm:$0xff] %v1118
        %1151 = vst [vmem:[%s203 + $0xe8] sm:$0xff] %v1119
        %1152 = vst [vmem:[%s203 + $0xf0] sm:$0xff] %v1120
        %1153 = vst [vmem:[%s203 + $0xf8] sm:$0xff] %v1121
        %s1154 = sand.u32 %s97, 1
        %s1155 = scalar_lea.sflag [#allocation4], %s1154
        %s1156 = sand.u32 %s97, 1
        %s1157 = smul.addr %s1156, 256
        %s1158 = scalar_lea.vmem [#allocation7], %s1157
        // Predicated region
        $region41: #{tpu_custom_call.1} parent=31 // pred_check
          %p1159 = pneg %p107
        $region42: #{tpu_custom_call.1} parent=31 // pred_check_branch
          %1161 = sbr.rel (%p1159) target = $region44
        $region43: #{tpu_custom_call.1} parent=31 // pred_region
          %s1162 = smul.u32 32, %s21
          %s1164 = ssub.s32 4096, 4096
          %1165 = vsyncadd %s1155, %s1164
          %s1166 = smul.addr %s1162, 128
          %s1167 = scalar_lea.hbm %s3, %s1166
          %s1168 = sshll.u32 %s1158, 4
          %s1169 = int_to_ptr.vmem [resolvable:$true] %s1168
          %1174 = dma.vmem_to_hbm [thread:$0]  %s1169, 4096, %s1167, %s1155, 128, 128, 8
        $region44: #{tpu_custom_call.1} parent=31 // pred_fallthru
          _
      $region32: #{tpu_custom_call.1} parent=5 // pred_fallthru
        _
      %p1175 = scmp.le.s32.totalorder 2, %s16
      // Predicated region
      $region45: #{tpu_custom_call.1} parent=5 // pred_check
        %p1176 = pneg %p1175
      $region46: #{tpu_custom_call.1} parent=5 // pred_check_branch
        %1178 = sbr.rel (%p1176) target = $region48
      $region47: #{tpu_custom_call.1} parent=5 // pred_region
        %s1179 = ssub.s32 %s16, 2
        // Predicated region
        $region49: #{tpu_custom_call.1} parent=47 // pred_check
          %p1180 = pneg %p113
        $region50: #{tpu_custom_call.1} parent=47 // pred_check_branch
          %1182 = sbr.rel (%p1180) target = $region52
        $region51: #{tpu_custom_call.1} parent=47 // pred_region
          %s1183 = sand.u32 %s98, 1
          %s1184 = scalar_lea.sflag [#allocation4], %s1183
          %s1185 = sand.u32 %s98, 1
          %s1186 = smul.addr %s1185, 256
          %s1187 = scalar_lea.vmem [#allocation7], %s1186
          %1188 = dma.done %s1184, 4096
        $region52: #{tpu_custom_call.1} parent=47 // pred_fallthru
          _
      $region48: #{tpu_custom_call.1} parent=5 // pred_fallthru
        _
    $region6: #{tpu_custom_call.1} parent=1 // loop_footer
      %s20 = sadd.s32 1, %s16
    $region7: #{tpu_custom_call.1} parent=1 // loop_footer_branch
      %15 = sbr.rel target = $region3
    $region8: #{tpu_custom_call.1} parent=1 // loop_exit
      _
    %1189 = vsyncpa [#allocation3], 1
    %s1190 = scalar_lea.sflag [#allocation3], 1
    %1191 = vsyncpa %s1190, 1
    %1192 = vsyncpa [#allocation6], 1
    %1193 = vsyncpa [#allocation4], 1
    %s1194 = scalar_lea.sflag [#allocation4], 1
    %1195 = vsyncpa %s1194, 1

</llo_original>
